<compile_context>
chip_gen: v5e
topology: v5e:2x2
jax: 0.10.0
libtpu: 0.0.40
codegen_flags: <defaults>
</compile_context>

<pallas_src>
import functools
import types

import numpy as np
import jax
import jax.numpy as jnp
from jax.experimental import pallas as pl
from jax.experimental.pallas import tpu as pltpu

IGNORE = -255
_MAX_LANE_TILE = 32768                 # upper bound on lanes per grid step
_VMEM_INPUT_BUDGET = 6 * 1024 * 1024   # bytes of double-buffered input blocks per kernel
_VMEM_LIMIT = 32 * 1024 * 1024         # scoped VMEM request (safe on v5e/v6e/v7x)


def _cdiv(a, b):
    return -(-a // b)


def _lane_tile(hw, bytes_per_lane, max_tile=_MAX_LANE_TILE, budget=_VMEM_INPUT_BUDGET):
    """Pick a lane tile (multiple of 128) bounded by a per-kernel VMEM byte budget."""
    cap = max(budget // max(bytes_per_lane, 1), 128)
    t = min(max_tile, cap)
    t = max((t // 128) * 128, 128)
    if hw <= t:
        return hw, 1            # full extent as the last block dim (no 128 constraint)
    return t, _cdiv(hw, t)      # last block may overhang; masked in-kernel with an iota


# -----------------------------------------------------------------------------
# Kernel 1: fused 4x bilinear upsample + 2-class masked cross-entropy.
# Grid (B, row_tiles): B megacore-parallel, row tiles of the FULL-RES mask reduce.
# The quarter-res logit difference is upsampled in-kernel (two MXU matmuls),
# CE = softplus(logit of wrong class - logit of right class).
# -----------------------------------------------------------------------------
def _bilinear_up_matrix(n_in, n_out, n_rows):
    """(n_rows, n_in) matrix whose first n_out rows hold PyTorch bilinear
    (align_corners=False, border-clamped) upsample weights; padding rows are zero."""
    i = np.arange(n_out, dtype=np.float64)
    src = (i + 0.5) * (float(n_in) / float(n_out)) - 0.5
    i0 = np.floor(src).astype(np.int64)
    frac = src - i0
    i1 = np.clip(i0 + 1, 0, n_in - 1)
    i0 = np.clip(i0, 0, n_in - 1)
    m = np.zeros((n_rows, n_in), dtype=np.float32)
    rows = np.arange(n_out)
    m[rows, i0] += (1.0 - frac).astype(np.float32)
    m[rows, i1] += frac.astype(np.float32)
    return m


def _fused_fg_ce_kernel(lg_ref, mask_ref, rmat_ref, cmat_ref, out_ref, acc_ref,
                        *, ignore_index, n_rows_valid, tile_rows):
    r = pl.program_id(1)

    @pl.when(r == 0)
    def _():
        acc_ref[...] = jnp.zeros_like(acc_ref)

    lg = lg_ref[0].astype(jnp.float32)                     # (2, Hq, Wq) quarter-res logits
    diff = lg[1] - lg[0]                                   # bilinear is linear -> upsample diff
    rows = jnp.dot(rmat_ref[...], diff, preferred_element_type=jnp.float32)   # (TH, Wq)
    up = jnp.dot(rows, cmat_ref[...], preferred_element_type=jnp.float32)     # (TH, W)

    labels = mask_ref[0]                                   # (TH, W) int32
    row = jax.lax.broadcasted_iota(jnp.int32, (tile_rows, 1), 0) + r * tile_rows
    valid = (labels != ignore_index) & (row < n_rows_valid)

    # 2-class CE == softplus of (wrong-class logit - right-class logit), stable form.
    z = jnp.where(labels == 1, -up, up)
    ce = jnp.maximum(z, 0.0) + jnp.log(1.0 + jnp.exp(-jnp.abs(z)))
    acc_ref[0:1, :] += jnp.sum(jnp.where(valid, ce, 0.0), axis=0, keepdims=True)
    acc_ref[1:2, :] += jnp.sum(valid.astype(jnp.float32), axis=0, keepdims=True)

    @pl.when(r == pl.num_programs(1) - 1)
    def _():
        out_ref[...] = jnp.sum(acc_ref[...], axis=1, keepdims=True).reshape(1, 2, 1)


def fused_upsample4x_fg_ce_mean(fg_logits_q, fg_mask, ignore_index,
                                row_budget=4 * 1024 * 1024):
    """mean CE( bilinear_up_4x(fg_logits_q), fg_mask ) with the upsample fused in-kernel."""
    B, C2, Hq, Wq = fg_logits_q.shape
    assert C2 == 2, "fg head is 2-class"
    H, W = 4 * Hq, 4 * Wq
    assert fg_mask.shape == (B, H, W)

    per_row_bytes = W * 4 * 2                              # int32 mask rows, double buffered
    th = max((row_budget // per_row_bytes) // 8 * 8, 8)
    if th >= H:
        th, rt = H, 1
    else:
        rt = _cdiv(H, th)
    h_pad = th * rt

    rmat = jnp.asarray(_bilinear_up_matrix(Hq, H, h_pad))          # (h_pad, Hq)
    cmat = jnp.asarray(_bilinear_up_matrix(Wq, W, W).T)            # (Wq, W)

    out = pl.pallas_call(
        functools.partial(_fused_fg_ce_kernel, ignore_index=ignore_index,
                          n_rows_valid=H, tile_rows=th),
        out_shape=jax.ShapeDtypeStruct((B, 2, 1), jnp.float32),
        grid_spec=pltpu.PrefetchScalarGridSpec(
            num_scalar_prefetch=0, grid=(B, rt),
            in_specs=[pl.BlockSpec((1, 2, Hq, Wq), lambda b, r: (b, 0, 0, 0)),
                      pl.BlockSpec((1, th, W), lambda b, r: (b, r, 0)),
                      pl.BlockSpec((th, Hq), lambda b, r: (r, 0)),
                      pl.BlockSpec((Wq, W), lambda b, r: (0, 0))],
            out_specs=pl.BlockSpec((1, 2, 1), lambda b, r: (b, 0, 0)),
            scratch_shapes=[pltpu.VMEM((2, W), jnp.float32)]),
        compiler_params=pltpu.CompilerParams(
            dimension_semantics=("parallel", "arbitrary"),
            vmem_limit_bytes=_VMEM_LIMIT),
    )(fg_logits_q, fg_mask.astype(jnp.int32), rmat, cmat)

    s = jnp.sum(out[:, 0, 0])
    c = jnp.sum(out[:, 1, 0])
    # TODO(synk): torch returns NaN if every target is ignored; guarded with max(count, 1) here.
    return s / jnp.maximum(c, 1.0)


# -----------------------------------------------------------------------------
# Kernel 2: generic masked softmax cross-entropy over spatial maps (char-cls head).
# Grid (B, lane_tiles); (sum, count) packed into one (B, 2, 1) output.
# -----------------------------------------------------------------------------
def _spatial_ce_kernel(lg_ref, lb_ref, out_ref, acc_ref, *, ignore_index, n_valid, tile_n):
    i = pl.program_id(1)

    @pl.when(i == 0)
    def _():
        acc_ref[...] = jnp.zeros_like(acc_ref)

    logits = lg_ref[0].astype(jnp.float32)                 # (C, T)
    labels = lb_ref[0]                                     # (1, T) int32
    col = jax.lax.broadcasted_iota(jnp.int32, (1, tile_n), 1) + i * tile_n
    valid = (col < n_valid) & (labels != ignore_index)

    m = jnp.max(logits, axis=0, keepdims=True)
    z = logits - m
    lse = jnp.log(jnp.sum(jnp.exp(z), axis=0, keepdims=True))
    cidx = jax.lax.broadcasted_iota(jnp.int32, logits.shape, 0)
    picked = jnp.sum(jnp.where(cidx == labels, z, 0.0), axis=0, keepdims=True)
    acc_ref[0:1, :] += jnp.where(valid, lse - picked, 0.0)
    acc_ref[1:2, :] += valid.astype(jnp.float32)

    @pl.when(i == pl.num_programs(1) - 1)
    def _():
        out_ref[...] = jnp.sum(acc_ref[...], axis=1, keepdims=True).reshape(1, 2, 1)


def spatial_cross_entropy_mean(logits_nchw, labels_nhw, ignore_index):
    B, C, H, W = logits_nchw.shape
    HW = H * W
    lg = logits_nchw.reshape(B, C, HW)                     # layout-preserving reshape, no copy
    lb = labels_nhw.reshape(B, 1, HW).astype(jnp.int32)
    tile, kt = _lane_tile(HW, bytes_per_lane=(C + 1) * 4 * 2)
    out = pl.pallas_call(
        functools.partial(_spatial_ce_kernel, ignore_index=ignore_index,
                          n_valid=HW, tile_n=tile),
        out_shape=jax.ShapeDtypeStruct((B, 2, 1), jnp.float32),
        grid_spec=pltpu.PrefetchScalarGridSpec(
            num_scalar_prefetch=0, grid=(B, kt),
            in_specs=[pl.BlockSpec((1, C, tile), lambda b, i: (b, 0, i)),
                      pl.BlockSpec((1, 1, tile), lambda b, i: (b, 0, i))],
            out_specs=pl.BlockSpec((1, 2, 1), lambda b, i: (b, 0, 0)),
            scratch_shapes=[pltpu.VMEM((2, tile), jnp.float32)]),
        compiler_params=pltpu.CompilerParams(
            dimension_semantics=("parallel", "arbitrary"),
            vmem_limit_bytes=_VMEM_LIMIT),
    )(lg, lb)
    s = jnp.sum(out[:, 0, 0])
    c = jnp.sum(out[:, 1, 0])
    # TODO(synk): torch returns NaN if every target is ignored; guarded with max(count, 1) here.
    return s / jnp.maximum(c, 1.0)


# -----------------------------------------------------------------------------
# Kernel 3: EAST-style geo (IoU) + angle masked reductions for BOTH levels
# (text + char) in one pallas_call; 8 separate inputs, no glue-side concat/upcast.
# Output packed as (B, 8, 1): [geo_sum, geo_cnt, ang_sum, ang_cnt] x {text, char}.
# -----------------------------------------------------------------------------
def _geo_pair_kernel(t_tblr, t_or, t_geo, t_sc, c_tblr, c_or, c_geo, c_sc,
                     out_ref, acc_ref, *, n_valid, tile_n):
    i = pl.program_id(1)

    @pl.when(i == 0)
    def _():
        acc_ref[...] = jnp.zeros_like(acc_ref)

    col = jax.lax.broadcasted_iota(jnp.int32, (1, tile_n), 1) + i * tile_n
    inb = col < n_valid

    def level(tblr_ref, or_ref, geo_ref, sc_ref, base):
        tblr = tblr_ref[0].astype(jnp.float32)             # (4, T)
        theta_p = or_ref[0].astype(jnp.float32)            # (1, T)
        g = geo_ref[0].astype(jnp.float32)                 # (5, T)
        sc = sc_ref[0].astype(jnp.float32)                 # (1, T)
        d1p, d2p, d3p, d4p = tblr[0:1], tblr[1:2], tblr[2:3], tblr[3:4]
        d1g, d2g, d3g, d4g, theta_g = g[0:1], g[1:2], g[2:3], g[3:4], g[4:5]
        area_p = (d1p + d2p) * (d3p + d4p)
        area_g = (d1g + d2g) * (d3g + d4g)
        w_u = jnp.minimum(d3g, d3p) + jnp.minimum(d4g, d4p)
        h_u = jnp.minimum(d1g, d1p) + jnp.minimum(d2g, d2p)
        inter = w_u * h_u
        union = area_g + area_p - inter
        geo = -jnp.log((inter + 1.0) / (union + 1.0))
        ang = 1.0 - jnp.cos(theta_p - theta_g)
        m1 = inb & (sc == 1.0)
        mp = inb & (sc > 0.0)
        acc_ref[base + 0:base + 1, :] += jnp.where(m1, geo, 0.0)
        acc_ref[base + 1:base + 2, :] += m1.astype(jnp.float32)
        acc_ref[base + 2:base + 3, :] += jnp.where(mp, ang, 0.0)
        acc_ref[base + 3:base + 4, :] += mp.astype(jnp.float32)

    level(t_tblr, t_or, t_geo, t_sc, 0)
    level(c_tblr, c_or, c_geo, c_sc, 4)

    @pl.when(i == pl.num_programs(1) - 1)
    def _():
        out_ref[...] = jnp.sum(acc_ref[...], axis=1, keepdims=True).reshape(1, 8, 1)


def geo_angle_losses_pair(text_args, char_args):
    """Returns ((text_geo, text_angle), (char_geo, char_angle))."""

    def flat(tblr, orient, geomap, score_qt):
        B = tblr.shape[0]
        HW = tblr.shape[2] * tblr.shape[3]
        return (tblr.reshape(B, 4, HW), orient.reshape(B, 1, HW),
                geomap.reshape(B, 5, HW), score_qt.reshape(B, 1, HW)), HW

    (tt, to, tg, ts), HW = flat(*text_args)
    (ct, co, cg, cs), HW_c = flat(*char_args)
    assert HW == HW_c, "text/char quarter-res maps must share a spatial shape"
    B = tt.shape[0]

    tile, kt = _lane_tile(HW, bytes_per_lane=2 * 11 * 4 * 2 + 8 * 4)
    spec_c = lambda c: pl.BlockSpec((1, c, tile), lambda b, i: (b, 0, i))
    out = pl.pallas_call(
        functools.partial(_geo_pair_kernel, n_valid=HW, tile_n=tile),
        out_shape=jax.ShapeDtypeStruct((B, 8, 1), jnp.float32),
        grid_spec=pltpu.PrefetchScalarGridSpec(
            num_scalar_prefetch=0, grid=(B, kt),
            in_specs=[spec_c(4), spec_c(1), spec_c(5), spec_c(1),
                      spec_c(4), spec_c(1), spec_c(5), spec_c(1)],
            out_specs=pl.BlockSpec((1, 8, 1), lambda b, i: (b, 0, 0)),
            scratch_shapes=[pltpu.VMEM((8, tile), jnp.float32)]),
        compiler_params=pltpu.CompilerParams(
            dimension_semantics=("parallel", "arbitrary"),
            vmem_limit_bytes=_VMEM_LIMIT),
    )(tt, to, tg, ts, ct, co, cg, cs)

    def reduce(base):
        s = jnp.sum(out[:, base + 0, 0])
        c = jnp.sum(out[:, base + 1, 0])
        a = jnp.sum(out[:, base + 2, 0])
        ac = jnp.sum(out[:, base + 3, 0])
        geo = jnp.where(c > 0, s / jnp.maximum(c, 1.0), 0.0)
        ang = jnp.where(ac > 0, a / jnp.maximum(ac, 1.0), 0.0)
        return geo, ang

    return reduce(0), reduce(4)


# -----------------------------------------------------------------------------
# Kernel 4: per-(image, instance, channel) masked SSE + counts for alpha maps.
# Single fused MXU dot per tile: (K, T) one-hot instance masks @ (12, T)^T packed
# [fg*diff2 | fg | bg*diff2 | bg] -> (K, 12); HW is the reduction grid axis.
# -----------------------------------------------------------------------------
def _alpha_kernel(ap_ref, ag_ref, im_ref, out_ref, acc_ref, *, n_valid, tile_n, K):
    i = pl.program_id(1)

    @pl.when(i == 0)
    def _():
        acc_ref[...] = jnp.zeros_like(acc_ref)

    pred = ap_ref[0].astype(jnp.float32)                    # (3, T)
    gt = ag_ref[0].astype(jnp.float32)                      # (3, T)
    ins = im_ref[0].astype(jnp.float32)                     # (1, T)
    col = jax.lax.broadcasted_iota(jnp.int32, (1, tile_n), 1) + i * tile_n
    inb = col < n_valid

    diff2 = jnp.where(inb, (pred - gt) ** 2, 0.0)           # (3, T)
    fg = ((gt > 0) & inb).astype(jnp.float32)               # (3, T)
    bg = ((gt == 0) & inb).astype(jnp.float32)              # (3, T)
    kk = jax.lax.broadcasted_iota(jnp.float32, (K, tile_n), 0) + 1.0
    inst = ((ins == kk) & inb).astype(jnp.float32)          # (K, T)

    rhs = jnp.concatenate([fg * diff2, fg, bg * diff2, bg], axis=0)   # (12, T)
    acc_ref[...] += jax.lax.dot_general(
        inst, rhs, dimension_numbers=(((1,), (1,)), ((), ())),
        preferred_element_type=jnp.float32)                 # (K, 12)

    @pl.when(i == pl.num_programs(1) - 1)
    def _():
        out_ref[0] = acc_ref[...]


def alpha_instance_stats(alpha_pred, alpha_gt, text_ins_mask, K):
    B, C, H, W = alpha_pred.shape
    HW = H * W
    ap = alpha_pred.reshape(B, C, HW)
    ag = alpha_gt.reshape(B, C, HW)
    im = text_ins_mask.reshape(B, 1, HW)
    bytes_per_lane = (2 * C + 1) * 4 * 2 + (16 + K) * 4     # dbl-buffered inputs + rhs/inst temps
    tile, kt = _lane_tile(HW, bytes_per_lane=bytes_per_lane, max_tile=16384)
    packed = pl.pallas_call(
        functools.partial(_alpha_kernel, n_valid=HW, tile_n=tile, K=K),
        out_shape=jax.ShapeDtypeStruct((B, K, 12), jnp.float32),
        grid_spec=pltpu.PrefetchScalarGridSpec(
            num_scalar_prefetch=0, grid=(B, kt),
            in_specs=[pl.BlockSpec((1, C, tile), lambda b, i: (b, 0, i)),
                      pl.BlockSpec((1, C, tile), lambda b, i: (b, 0, i)),
                      pl.BlockSpec((1, 1, tile), lambda b, i: (b, 0, i))],
            out_specs=pl.BlockSpec((1, K, 12), lambda b, i: (b, 0, 0)),
            scratch_shapes=[pltpu.VMEM((K, 12), jnp.float32)]),
        compiler_params=pltpu.CompilerParams(
            dimension_semantics=("parallel", "arbitrary"),
            vmem_limit_bytes=_VMEM_LIMIT),
    )(ap, ag, im)
    return packed[..., 0:3], packed[..., 3:6], packed[..., 6:9], packed[..., 9:12]


# -----------------------------------------------------------------------------
# Tiny (B*K)-row masked cross-entropy in plain jnp (no Pallas launch overhead).
# -----------------------------------------------------------------------------
def _jnp_masked_ce(logits_nc, labels_n, ignore_index):
    valid = labels_n != ignore_index
    lg = logits_nc.astype(jnp.float32)
    m = jnp.max(lg, axis=-1, keepdims=True)
    z = lg - m
    lse = jnp.log(jnp.sum(jnp.exp(z), axis=-1))
    safe = jnp.where(valid, labels_n, 0).astype(jnp.int32)
    picked = jnp.take_along_axis(z, safe[:, None], axis=-1)[:, 0]
    ce = jnp.where(valid, lse - picked, 0.0)
    return jnp.sum(ce), jnp.sum(valid.astype(jnp.float32))


# -----------------------------------------------------------------------------
# The loss module (JAX/Pallas port of TextParserLossFunc.forward)
# -----------------------------------------------------------------------------
class TextParserLossFuncPallas:
    def __init__(self, text_pool_num=10):
        self.text_pool_num = text_pool_num
        self.label_num = 5
        self.stroke_param_num = 1
        self.oglow_param_num = 5
        self.ignore_labl = IGNORE

    # ---- glue helpers -------------------------------------------------------
    def modify_char_fg_mask(self, char_fg_mask, char_scoremap):
        v = jnp.full_like(char_fg_mask, IGNORE)
        v = jnp.where(char_scoremap == 1, 1, v)
        v = jnp.where(char_scoremap == IGNORE, IGNORE, v)
        v = jnp.where((char_fg_mask == 1) & (char_scoremap == 0), 0, v)
        return v

    # ---- sub-losses ---------------------------------------------------------
    def compute_ocr_loss(self, ocr_pred, ocr_data):
        text_preds, char_preds, recognition_results = ocr_pred
        text_fg_pred, text_tblr_pred, text_orient_pred = text_preds
        char_fg_pred, char_tblr_pred, char_orient_pred = char_preds
        text_level_data, char_level_data = ocr_data
        (text_fg_mask, text_ins_mask, text_scoremap, text_scoremap_qt,
         text_geomap, _text_rect) = text_level_data
        (char_fg_mask, _char_ins_mask, char_scoremap, char_scoremap_qt,
         char_geomap, char_cls_mask, _char_rect) = char_level_data

        # fg CE with the 4x bilinear upsample fused into the Pallas kernel
        char_fg_mask_v = self.modify_char_fg_mask(char_fg_mask, char_scoremap)
        text_fg_loss = fused_upsample4x_fg_ce_mean(text_fg_pred, text_fg_mask, IGNORE)
        char_fg_loss = fused_upsample4x_fg_ce_mean(char_fg_pred, char_fg_mask_v, IGNORE)

        # F.interpolate default 'nearest' with an integer scale == strided subsample
        # TODO(synk): non-integer down-scale factors are not handled.
        Hr, Wr = recognition_results.shape[2:4]
        Hc, Wc = char_cls_mask.shape[1:3]
        char_cls_mask_ds = char_cls_mask[:, ::Hc // Hr, ::Wc // Wr]
        char_cls_loss = spatial_cross_entropy_mean(
            recognition_results, char_cls_mask_ds.astype(jnp.int32), -1)

        # text + char geo/angle losses in a single pallas_call (8 direct inputs)
        (text_geo_loss, text_angle_loss), (char_geo_loss, char_angle_loss) = \
            geo_angle_losses_pair(
                (text_tblr_pred, text_orient_pred, text_geomap, text_scoremap_qt),
                (char_tblr_pred, char_orient_pred, char_geomap, char_scoremap_qt))

        detection_branch_loss = text_geo_loss + 10 * text_angle_loss + text_fg_loss
        char_branch_loss = 10 * char_angle_loss + char_cls_loss + char_geo_loss + char_fg_loss
        ocr_loss = detection_branch_loss + char_branch_loss
        ocr_loss_items = (ocr_loss, text_fg_loss, char_fg_loss, char_cls_loss,
                          text_geo_loss, 10 * text_angle_loss,
                          char_geo_loss, 10 * char_angle_loss)
        return ocr_loss, ocr_loss_items

    def font_loss(self, font_pred, font_label, valid_indexes):
        B, K, C = font_pred.shape
        valid = valid_indexes.reshape(B * K) == 1
        labels_flat = font_label.reshape(B * K)
        cond = (jnp.sum(labels_flat != IGNORE) > 0) & (jnp.sum(valid_indexes) > 0)
        labels = jnp.where(valid, labels_flat, IGNORE).astype(jnp.int32)
        s, c = _jnp_masked_ce(font_pred.reshape(B * K, C), labels, IGNORE)
        return jnp.where(cond, s / jnp.maximum(c, 1.0), 0.0)

    def effect_visibility_loss(self, effect_visibility_outs, shadow_data, stroke_data,
                               valid_indexes):
        shadow_vis, stroke_vis = effect_visibility_outs        # (B, K, 2)
        _, shadow_vis_gt = shadow_data
        _, stroke_vis_gt = stroke_data
        B, K, C = shadow_vis.shape
        valid = valid_indexes.reshape(B * K) == 1

        def one(vis, gt):
            gt_flat = gt.reshape(B * K)
            labels = jnp.where(valid & (gt_flat != IGNORE), gt_flat, IGNORE).astype(jnp.int32)
            s, c = _jnp_masked_ce(vis.reshape(B * K, C), labels, IGNORE)
            return s / jnp.maximum(c, 1.0)        # torch: sum of per-row CE / max(cnt, 1)

        return one(shadow_vis, shadow_vis_gt), one(stroke_vis, stroke_vis_gt)

    def effect_param_loss(self, effect_param_outs, shadow_data, stroke_data, valid_indexes):
        shadow_param_sig, shadow_param_tanh, stroke_param = effect_param_outs
        shadow_param_gt, _ = shadow_data
        stroke_param_gt, _ = stroke_data
        B, K = valid_indexes.shape
        valid = valid_indexes.reshape(B * K) == 1

        sig = shadow_param_sig.reshape(B * K, -1).astype(jnp.float32)
        tanh = shadow_param_tanh.reshape(B * K, -1).astype(jnp.float32)
        sgt = shadow_param_gt.reshape(B * K, -1).astype(jnp.float32)
        any_shadow = jnp.sum((sgt != IGNORE) & valid[:, None]) > 0

        def masked_mse(pred, gt):   # tiny (B*K, 2) MSE kept in plain JAX glue
            m = valid[:, None] & (gt != IGNORE)
            c = jnp.sum(m.astype(jnp.float32))
            s = jnp.sum(jnp.where(m, (pred - gt) ** 2, 0.0))
            return s / jnp.maximum(c, 1.0)

        shadow_param_loss = jnp.where(
            any_shadow, masked_mse(sig, sgt[:, 0:2]) + masked_mse(tanh, sgt[:, 3:5]), 0.0)

        sgt_stroke = stroke_param_gt.reshape(B * K)
        any_stroke = jnp.sum(sgt_stroke != IGNORE) > 0
        labels = jnp.where(valid, sgt_stroke, IGNORE).astype(jnp.int32)
        s, c = _jnp_masked_ce(stroke_param.reshape(B * K, -1), labels, IGNORE)
        stroke_param_loss = jnp.where(any_stroke, s / jnp.maximum(c, 1.0), 0.0)
        return shadow_param_loss, stroke_param_loss

    def alpha_estimation_loss(self, alpha_pred, alpha_gt, text_ins_mask):
        # TODO(synk): torch loops up to the data-dependent max instance id per image
        #             (.item()); here instances are statically capped at text_pool_num.
        K = self.text_pool_num
        sfg, cfg, sbg, cbg = alpha_instance_stats(alpha_pred, alpha_gt, text_ins_mask, K)

        def reduce(sse, cnt):
            mse = jnp.where(cnt > 0, sse / jnp.maximum(cnt, 1.0), 0.0)   # (B, K, 3)
            n = jnp.sum((cnt > 0).astype(jnp.float32), axis=(0, 1))      # (3,)
            return jnp.sum(mse, axis=(0, 1)) / jnp.maximum(n, 1.0)       # (3,)

        fg = reduce(sfg, cfg)
        bg = reduce(sbg, cbg)
        return (fg[0], bg[0], fg[1], bg[1], fg[2], bg[2])

    def get_text_ins_mask(self, ocr_data):
        return ocr_data[0][1]

    # ---- forward ------------------------------------------------------------
    def __call__(self, inputs, outputs):
        img_norm, img_org, ocr_data, style_data = inputs
        alpha, shadow_data, stroke_data, font_label, valid_text_index = style_data
        textinfo, _ = outputs

        ocr_loss, ocr_loss_items = self.compute_ocr_loss(textinfo.ocr_outs, ocr_data)
        font_loss = self.font_loss(textinfo.font_outs, font_label, valid_text_index)
        shadow_visibility_loss, stroke_visibility_loss = self.effect_visibility_loss(
            textinfo.effect_visibility_outs, shadow_data, stroke_data, valid_text_index)
        shadow_param_loss, stroke_param_loss = self.effect_param_loss(
            textinfo.effect_param_outs, shadow_data, stroke_data, valid_text_index)
        alpha_losses = self.alpha_estimation_loss(
            textinfo.alpha_outs, alpha, self.get_text_ins_mask(ocr_data))
        (fill_fg, fill_bg, shadow_fg, shadow_bg, stroke_fg, stroke_bg) = alpha_losses

        alpha_loss = (10 * fill_fg + 1 * fill_bg + 10 * shadow_fg + 1 * shadow_bg
                      + 10 * stroke_fg + 1 * stroke_bg)
        visibility_loss = shadow_visibility_loss + stroke_visibility_loss
        param_loss = shadow_param_loss + stroke_param_loss * 0.1
        total_loss = ocr_loss + font_loss * 0.1 + alpha_loss + visibility_loss + param_loss

        shadow_loss = (shadow_param_loss, shadow_visibility_loss)
        stroke_loss = (stroke_param_loss, stroke_visibility_loss)
        effect_loss_items = (shadow_loss, stroke_loss)
        loss_items = (ocr_loss_items, effect_loss_items, alpha_losses, font_loss)
        return total_loss, loss_items


# -----------------------------------------------------------------------------
# Example run with small deterministic synthetic data
# -----------------------------------------------------------------------------
if __name__ == "__main__":
    B, H, W = 2, 32, 32
    Hq, Wq = H // 4, W // 4
    K = 4                       # text_pool_num
    N_FONT, N_CHAR, N_STROKE = 8, 8, 4

    key = jax.random.PRNGKey(0)
    ks = list(jax.random.split(key, 48))
    nk = lambda: ks.pop()

    # ---- OCR ground truth ----
    text_fg_mask = jax.random.randint(nk(), (B, H, W), 0, 2, dtype=jnp.int32)
    text_ins_mask = jax.random.randint(nk(), (B, H, W), 0, K + 1, dtype=jnp.int32)
    text_scoremap = jax.random.randint(nk(), (B, H, W), 0, 2, dtype=jnp.int32)
    text_scoremap_qt = jax.random.randint(nk(), (B, Hq, Wq), 0, 2, dtype=jnp.int32)
    text_geomap = jax.random.uniform(nk(), (B, 5, Hq, Wq), minval=0.1, maxval=1.0)
    text_rect = jnp.zeros((B, K, 8), jnp.float32)
    text_level_data = (text_fg_mask, text_ins_mask, text_scoremap,
                       text_scoremap_qt, text_geomap, text_rect)

    char_fg_mask = jax.random.randint(nk(), (B, H, W), 0, 2, dtype=jnp.int32)
    char_ins_mask = jax.random.randint(nk(), (B, H, W), 0, K + 1, dtype=jnp.int32)
    r = jax.random.randint(nk(), (B, H, W), 0, 10, dtype=jnp.int32)
    char_scoremap = jnp.where(r < 5, 0, jnp.where(r < 9, 1, IGNORE)).astype(jnp.int32)
    char_scoremap_qt = jax.random.randint(nk(), (B, Hq, Wq), 0, 2, dtype=jnp.int32)
    char_geomap = jax.random.uniform(nk(), (B, 5, Hq, Wq), minval=0.1, maxval=1.0)
    char_cls_mask = jax.random.randint(nk(), (B, H, W), -1, N_CHAR, dtype=jnp.int32)
    char_rect = jnp.zeros((B, K, 8), jnp.float32)
    char_level_data = (char_fg_mask, char_ins_mask, char_scoremap,
                       char_scoremap_qt, char_geomap, char_cls_mask, char_rect)
    ocr_data = (text_level_data, char_level_data)

    # ---- style ground truth ----
    alpha_gt = jnp.where(jax.random.uniform(nk(), (B, 3, H, W)) < 0.3, 0.0,
                         jax.random.uniform(nk(), (B, 3, H, W)))
    shadow_param_gt = jnp.where(jax.random.uniform(nk(), (B, K, 5)) < 0.2,
                                float(IGNORE), jax.random.uniform(nk(), (B, K, 5)))
    shadow_vis_gt = jnp.where(jax.random.uniform(nk(), (B, K)) < 0.2, IGNORE,
                              jax.random.randint(nk(), (B, K), 0, 2)).astype(jnp.int32)
    stroke_param_gt = jnp.where(jax.random.uniform(nk(), (B, K)) < 0.2, IGNORE,
                                jax.random.randint(nk(), (B, K), 0, N_STROKE)).astype(jnp.int32)
    stroke_vis_gt = jnp.where(jax.random.uniform(nk(), (B, K)) < 0.2, IGNORE,
                              jax.random.randint(nk(), (B, K), 0, 2)).astype(jnp.int32)
    font_label = jnp.where(jax.random.uniform(nk(), (B, K)) < 0.2, IGNORE,
                           jax.random.randint(nk(), (B, K), 0, N_FONT)).astype(jnp.int32)
    valid_text_index = jax.random.randint(nk(), (B, K), 0, 2, dtype=jnp.int32)
    # guarantee one fully valid slot per image so every mean is well defined
    valid_text_index = valid_text_index.at[:, 0].set(1)
    font_label = font_label.at[:, 0].set(0)
    shadow_vis_gt = shadow_vis_gt.at[:, 0].set(1)
    stroke_vis_gt = stroke_vis_gt.at[:, 0].set(1)
    stroke_param_gt = stroke_param_gt.at[:, 0].set(1)
    shadow_param_gt = shadow_param_gt.at[:, 0, :].set(0.5)

    shadow_data = (shadow_param_gt, shadow_vis_gt)
    stroke_data = (stroke_param_gt, stroke_vis_gt)
    style_data = (alpha_gt, shadow_data, stroke_data, font_label, valid_text_index)

    img_norm = jnp.zeros((B, 3, H, W), jnp.float32)
    img_org = jnp.zeros((B, 3, H, W), jnp.float32)
    inputs = (img_norm, img_org, ocr_data, style_data)

    # ---- model predictions (textinfo) ----
    text_preds = (jax.random.normal(nk(), (B, 2, Hq, Wq)),
                  jax.random.uniform(nk(), (B, 4, Hq, Wq), minval=0.1, maxval=1.0),
                  jax.random.uniform(nk(), (B, 1, Hq, Wq), minval=-0.5, maxval=0.5))
    char_preds = (jax.random.normal(nk(), (B, 2, Hq, Wq)),
                  jax.random.uniform(nk(), (B, 4, Hq, Wq), minval=0.1, maxval=1.0),
                  jax.random.uniform(nk(), (B, 1, Hq, Wq), minval=-0.5, maxval=0.5))
    recognition_results = jax.random.normal(nk(), (B, N_CHAR, Hq, Wq))
    textinfo = types.SimpleNamespace(
        ocr_outs=(text_preds, char_preds, recognition_results),
        font_outs=jax.random.normal(nk(), (B, K, N_FONT)),
        effect_visibility_outs=(jax.random.normal(nk(), (B, K, 2)),
                                jax.random.normal(nk(), (B, K, 2))),
        effect_param_outs=(jax.nn.sigmoid(jax.random.normal(nk(), (B, K, 2))),
                           jnp.tanh(jax.random.normal(nk(), (B, K, 2))),
                           jax.random.normal(nk(), (B, K, N_STROKE))),
        alpha_outs=jax.random.uniform(nk(), (B, 3, H, W)))
    outputs = (textinfo, None)

    loss_fn = TextParserLossFuncPallas(text_pool_num=K)
    total_loss, loss_items = loss_fn(inputs, outputs)
    total_loss = jax.block_until_ready(total_loss)
    assert bool(jnp.isfinite(total_loss)), "total loss is not finite"
    print("KERNEL_OK")
</pallas_src>

<mosaic_0001>
module attributes {stable_mosaic.version = 11 : i64} {
  func.func @_fused_fg_ce_kernel(%arg0: i32, %arg1: i32, %arg2: memref<1x2x8x8xf32, #tpu.memory_space<vmem>>, %arg3: memref<1x32x32xi32, #tpu.memory_space<vmem>>, %arg4: memref<32x8xf32, #tpu.memory_space<vmem>>, %arg5: memref<8x32xf32, #tpu.memory_space<vmem>>, %arg6: memref<1x2x1xf32, #tpu.memory_space<vmem>>, %arg7: memref<2x32xf32, #tpu.memory_space<vmem>>) attributes {dimension_semantics = [#tpu.dimension_semantics<parallel>, #tpu.dimension_semantics<arbitrary>], iteration_bounds = array<i64: 2, 1>, scalar_prefetch = 0 : i64, scratch_operands = 1 : i64, tpu.core_type = #tpu.core_type<tc>, window_params = [{transform_indices = @transform_0, window_bounds = array<i64: 1, 2, 8, 8>}, {transform_indices = @transform_1, window_bounds = array<i64: 1, 32, 32>}, {transform_indices = @transform_2, window_bounds = array<i64: 32, 8>}, {pipeline_mode = #tpu.pipeline_mode<synchronous>, transform_indices = @transform_3, window_bounds = array<i64: 8, 32>}, {transform_indices = @transform_4, window_bounds = array<i64: 1, 2, 1>}]} {
    %c0_i32 = arith.constant 0 : i32
    %0 = arith.cmpi eq, %arg1, %c0_i32 : i32
    %1 = arith.extui %0 : i1 to i32
    %c0_i32_0 = arith.constant 0 : i32
    %2 = arith.cmpi ne, %1, %c0_i32_0 : i32
    scf.if %2 {
      %cst_29 = arith.constant 0.000000e+00 : f32
      %58 = vector.broadcast %cst_29 : f32 to vector<2x32xf32>
      %c0_30 = arith.constant 0 : index
      %c0_31 = arith.constant 0 : index
      %59 = vector.load %arg7[%c0_30, %c0_31] : memref<2x32xf32, #tpu.memory_space<vmem>>, vector<2x32xf32>
      tpu.vector_store %arg7[%c0_30, %c0_31], %58 {strides = array<i32>} : memref<2x32xf32, #tpu.memory_space<vmem>>, vector<2x32xf32>,
    } else {
    }
    %c0 = arith.constant 0 : index
    %c0_1 = arith.constant 0 : index
    %c0_2 = arith.constant 0 : index
    %c0_3 = arith.constant 0 : index
    %3 = vector.load %arg2[%c0, %c0_1, %c0_2, %c0_3] : memref<1x2x8x8xf32, #tpu.memory_space<vmem>>, vector<1x2x8x8xf32>
    %4 = vector.shape_cast %3 : vector<1x2x8x8xf32> to vector<2x8x8xf32>
    %5 = vector.extract_strided_slice %4 {offsets = [1, 0, 0], sizes = [1, 8, 8], strides = [1, 1, 1]} : vector<2x8x8xf32> to vector<1x8x8xf32>
    %6 = vector.shape_cast %5 : vector<1x8x8xf32> to vector<8x8xf32>
    %7 = vector.extract_strided_slice %4 {offsets = [0, 0, 0], sizes = [1, 8, 8], strides = [1, 1, 1]} : vector<2x8x8xf32> to vector<1x8x8xf32>
    %8 = vector.shape_cast %7 : vector<1x8x8xf32> to vector<8x8xf32>
    %9 = arith.subf %6, %8 : vector<8x8xf32>
    %c0_4 = arith.constant 0 : index
    %c0_5 = arith.constant 0 : index
    %10 = vector.load %arg4[%c0_4, %c0_5] : memref<32x8xf32, #tpu.memory_space<vmem>>, vector<32x8xf32>
    %cst = arith.constant dense<0.000000e+00> : vector<32x8xf32>
    %11 = tpu.matmul %10, %9, %cst {dimension_numbers = #tpu.dot_dimension_numbers<[1], [0], [0], [1], [0, 0, 1, 1], [], []>} : vector<32x8xf32>, vector<8x8xf32>, vector<32x8xf32> -> vector<32x8xf32>
    %c0_6 = arith.constant 0 : index
    %c0_7 = arith.constant 0 : index
    %12 = vector.load %arg5[%c0_6, %c0_7] : memref<8x32xf32, #tpu.memory_space<vmem>>, vector<8x32xf32>
    %cst_8 = arith.constant dense<0.000000e+00> : vector<32x32xf32>
    %13 = tpu.matmul %11, %12, %cst_8 {dimension_numbers = #tpu.dot_dimension_numbers<[1], [0], [0], [1], [0, 0, 1, 1], [], []>} : vector<32x8xf32>, vector<8x32xf32>, vector<32x32xf32> -> vector<32x32xf32>
    %c0_9 = arith.constant 0 : index
    %c0_10 = arith.constant 0 : index
    %c0_11 = arith.constant 0 : index
    %14 = vector.load %arg3[%c0_9, %c0_10, %c0_11] : memref<1x32x32xi32, #tpu.memory_space<vmem>>, vector<1x32x32xi32>
    %15 = vector.shape_cast %14 : vector<1x32x32xi32> to vector<32x32xi32>
    %16 = tpu.iota {dimensions = array<i32: 0>} : vector<32x1xi32>
    %c32_i32 = arith.constant 32 : i32
    %17 = arith.muli %arg1, %c32_i32 : i32
    %18 = vector.broadcast %17 : i32 to vector<32x1xi32>
    %19 = arith.addi %16, %18 : vector<32x1xi32>
    %c-255_i32 = arith.constant -255 : i32
    %20 = vector.broadcast %c-255_i32 : i32 to vector<32x32xi32>
    %21 = arith.cmpi ne, %15, %20 : vector<32x32xi32>
    %c32_i32_12 = arith.constant 32 : i32
    %22 = vector.broadcast %c32_i32_12 : i32 to vector<32x1xi32>
    %23 = arith.cmpi slt, %19, %22 : vector<32x1xi32>
    %24 = vector.broadcast %23 : vector<32x1xi1> to vector<32x32xi1>
    %25 = arith.andi %21, %24 : vector<32x32xi1>
    %c1_i32 = arith.constant 1 : i32
    %26 = vector.broadcast %c1_i32 : i32 to vector<32x32xi32>
    %27 = arith.cmpi eq, %15, %26 : vector<32x32xi32>
    %cst_13 = arith.constant 0.000000e+00 : f32
    %28 = vector.broadcast %cst_13 : f32 to vector<32x32xf32>
    %29 = arith.subf %28, %13 : vector<32x32xf32>
    %30 = arith.select %27, %29, %13 : vector<32x32xi1>, vector<32x32xf32>
    %cst_14 = arith.constant 0.000000e+00 : f32
    %31 = vector.broadcast %cst_14 : f32 to vector<32x32xf32>
    %32 = arith.maximumf %30, %31 : vector<32x32xf32>
    %33 = math.absf %30 : vector<32x32xf32>
    %cst_15 = arith.constant 0.000000e+00 : f32
    %34 = vector.broadcast %cst_15 : f32 to vector<32x32xf32>
    %35 = arith.subf %34, %33 : vector<32x32xf32>
    %36 = math.exp %35 : vector<32x32xf32>
    %cst_16 = arith.constant 1.000000e+00 : f32
    %37 = vector.broadcast %cst_16 : f32 to vector<32x32xf32>
    %38 = arith.addf %37, %36 : vector<32x32xf32>
    %39 = math.log %38 : vector<32x32xf32>
    %40 = arith.addf %32, %39 : vector<32x32xf32>
    %c0_17 = arith.constant 0 : index
    %c0_18 = arith.constant 0 : index
    %41 = vector.load %arg7[%c0_17, %c0_18] : memref<2x32xf32, #tpu.memory_space<vmem>>, vector<1x32xf32>
    %cst_19 = arith.constant 0.000000e+00 : f32
    %42 = vector.broadcast %cst_19 : f32 to vector<32x32xf32>
    %43 = arith.select %25, %40, %42 : vector<32x32xi1>, vector<32x32xf32>
    %cst_20 = arith.constant dense<0.000000e+00> : vector<32xf32>
    %44 = vector.multi_reduction <add>, %43, %cst_20 [0] : vector<32x32xf32> to vector<32xf32>
    %45 = vector.shape_cast %44 : vector<32xf32> to vector<1x32xf32>
    %46 = arith.addf %41, %45 : vector<1x32xf32>
    %c0_21 = arith.constant 0 : index
    %c0_22 = arith.constant 0 : index
    %47 = vector.load %arg7[%c0_21, %c0_22] : memref<2x32xf32, #tpu.memory_space<vmem>>, vector<1x32xf32>
    tpu.vector_store %arg7[%c0_21, %c0_22], %46 {strides = array<i32>} : memref<2x32xf32, #tpu.memory_space<vmem>>, vector<1x32xf32>,
    %c1 = arith.constant 1 : index
    %c0_23 = arith.constant 0 : index
    %48 = vector.load %arg7[%c1, %c0_23] : memref<2x32xf32, #tpu.memory_space<vmem>>, vector<1x32xf32>
    %49 = arith.extui %25 : vector<32x32xi1> to vector<32x32xi32>
    %50 = arith.sitofp %49 : vector<32x32xi32> to vector<32x32xf32>
    %cst_24 = arith.constant dense<0.000000e+00> : vector<32xf32>
    %51 = vector.multi_reduction <add>, %50, %cst_24 [0] : vector<32x32xf32> to vector<32xf32>
    %52 = vector.shape_cast %51 : vector<32xf32> to vector<1x32xf32>
    %53 = arith.addf %48, %52 : vector<1x32xf32>
    %c1_25 = arith.constant 1 : index
    %c0_26 = arith.constant 0 : index
    %54 = vector.load %arg7[%c1_25, %c0_26] : memref<2x32xf32, #tpu.memory_space<vmem>>, vector<1x32xf32>
    tpu.vector_store %arg7[%c1_25, %c0_26], %53 {strides = array<i32>} : memref<2x32xf32, #tpu.memory_space<vmem>>, vector<1x32xf32>,
    %c0_i32_27 = arith.constant 0 : i32
    %55 = arith.cmpi eq, %arg1, %c0_i32_27 : i32
    %56 = arith.extui %55 : i1 to i32
    %c0_i32_28 = arith.constant 0 : i32
    %57 = arith.cmpi ne, %56, %c0_i32_28 : i32
    scf.if %57 {
      %c0_29 = arith.constant 0 : index
      %c0_30 = arith.constant 0 : index
      %58 = vector.load %arg7[%c0_29, %c0_30] : memref<2x32xf32, #tpu.memory_space<vmem>>, vector<2x32xf32>
      %cst_31 = arith.constant dense<0.000000e+00> : vector<2xf32>
      %59 = vector.multi_reduction <add>, %58, %cst_31 [1] : vector<2x32xf32> to vector<2xf32>
      %60 = vector.shape_cast %59 : vector<2xf32> to vector<2x1xf32>
      %61 = vector.shape_cast %60 : vector<2x1xf32> to vector<1x2x1xf32>
      %c0_32 = arith.constant 0 : index
      %c0_33 = arith.constant 0 : index
      %c0_34 = arith.constant 0 : index
      %62 = vector.load %arg6[%c0_32, %c0_33, %c0_34] : memref<1x2x1xf32, #tpu.memory_space<vmem>>, vector<1x2x1xf32>
      tpu.vector_store %arg6[%c0_32, %c0_33, %c0_34], %61 {strides = array<i32>} : memref<1x2x1xf32, #tpu.memory_space<vmem>>, vector<1x2x1xf32>,
    } else {
    }
    return
  }
  func.func @transform_0(%arg0: i32, %arg1: i32) -> (i32, i32, i32, i32) {
    %c0_i32 = arith.constant 0 : i32
    %c0_i32_0 = arith.constant 0 : i32
    %c0_i32_1 = arith.constant 0 : i32
    %c0_i32_2 = arith.constant 0 : i32
    return %arg0, %c0_i32, %c0_i32_0, %c0_i32_1 : i32, i32, i32, i32
  }
  func.func @transform_1(%arg0: i32, %arg1: i32) -> (i32, i32, i32) {
    %c0_i32 = arith.constant 0 : i32
    %c0_i32_0 = arith.constant 0 : i32
    return %arg0, %arg1, %c0_i32 : i32, i32, i32
  }
  func.func @transform_2(%arg0: i32, %arg1: i32) -> (i32, i32) {
    %c0_i32 = arith.constant 0 : i32
    %c0_i32_0 = arith.constant 0 : i32
    return %arg1, %c0_i32 : i32, i32
  }
  func.func @transform_3(%arg0: i32, %arg1: i32) -> (i32, i32) {
    %c0_i32 = arith.constant 0 : i32
    %c0_i32_0 = arith.constant 0 : i32
    %c0_i32_1 = arith.constant 0 : i32
    return %c0_i32, %c0_i32_0 : i32, i32
  }
  func.func @transform_4(%arg0: i32, %arg1: i32) -> (i32, i32, i32) {
    %c0_i32 = arith.constant 0 : i32
    %c0_i32_0 = arith.constant 0 : i32
    %c0_i32_1 = arith.constant 0 : i32
    return %arg0, %c0_i32, %c0_i32_0 : i32, i32, i32
  }
}

</mosaic_0001>

<llo_original>
// kernel: tpu_custom_call.1
$region0: #{tpu_custom_call.1}
  #allocation0 [shape = 'u32[]', space=smem, size = 0x4, offset = 0x4, fixed_abs, tag = 'smem constant byte address 0x4 - core index']
  #allocation1 [shape = 'u32[72,128]{1,0:T(1,128)}', space=vmem, size = 0x9000, scoped, tag = 'internal scratch']
  #allocation2 [shape = 'f32[2,32]{1,0:T(2,128)}', space=vmem, size = 0x400, scoped, tag = 'scratch operand']
  %s0 = inlined_call_operand.vmem [shape: f32[2,2,8,8], index: 0, kind: input, shape index: {}]
  %s1 = inlined_call_operand.hbm [shape: s32[2,32,32], index: 1, kind: input, shape index: {}]
  %s2 = inlined_call_operand.vmem [shape: f32[32,8], index: 2, kind: input, shape index: {}]
  %s3 = inlined_call_operand.vmem [shape: f32[8,32], index: 3, kind: input, shape index: {}]
  %s4 = inlined_call_operand.vmem [shape: f32[2,2,1], index: 4, kind: output, shape index: {}]
  %s5 = sld [smem:[#allocation0]]
  $region61: #{tpu_custom_call.1} parent=0
    _
  %s7 = ssub.s32 1, %s5
  %s8 = scalar_select 0, %s7, %s5
  $region1: #{tpu_custom_call.1} parent=0
    #allocation3 [shape = 'u8[32768]{0}', space=vmem, size = 0x8000, scoped, tag = 'input window, operand 1']
    #allocation4 [shape = 's32[2]{0}', space=sflag, size = 0x8, scoped, tag = 'scoped memory for tpu_custom_call.1']
    %9 = vsyncpa [#allocation4], 0
    %s10 = scalar_lea.sflag [#allocation4], 1
    %11 = vsyncpa %s10, 0
    loop: start=0, step=1, limit=4
    $region2: #{tpu_custom_call.1} parent=1 // loop_pre_header
      _
    $region3: #{tpu_custom_call.1} parent=1 // loop_header
      %s13 = sphi 0, %s17
      %p14 = scmp.ge.s32.totalorder %s13, 4
      %s20 = sphi 0, %s32
      %s21 = sphi 0, %s28
      %s22 = sphi 0, %s20
      %s23 = sphi 0, %s21
      %s24 = sphi 0, %s22
      %s25 = sphi 0, %s23
      %s35 = sphi 0, %s37
      %s38 = sphi 0, %s35
      %s39 = sphi 0, %s38
      %s55 = sphi 0, %s39
      %s63 = sphi 0, %s65
      %s66 = sphi 0, %s63
      %s67 = sphi 0, %s66
      %s83 = sphi 0, %s67
      %s89 = sphi 0, %s91
      %s92 = sphi 0, %s89
      %s93 = sphi 0, %s92
      %s109 = sphi 0, %s93
      %s113 = sphi 0, %s113
      %s115 = sphi 0, %s113
      %s116 = sphi 0, %s115
      %s130 = sphi 0, %s116
      %s136 = sphi 0, %s138
      %s139 = sphi 0, %s136
      %s140 = sphi 0, %s139
      %s156 = sphi 0, %s140
    $region4: #{tpu_custom_call.1} parent=1 // loop_header_branch
      %16 = sbr.rel (%p14) target = $region8
    $region5: #{tpu_custom_call.1} parent=1 // loop_body
      %s18 = ssub.s32 %s13, 1
      %s19 = ssub.s32 %s13, 2
      %s26 = sadd.s32 1, %s21
      %p27 = scmp.ge.s32.totalorder %s26, 1
      %s28 = scalar_select %p27, 0, %s26
      %s29 = sadd.s32 1, %s20
      %s30 = scalar_select %p27, %s29, %s20
      %p31 = scmp.ge.s32.totalorder %s30, 2
      %s32 = scalar_select %p31, 0, %s30
      %s33 = ssub.s32 %s20, %s32
      %p34 = scmp.eq.s32.totalorder %s33, 0
      %s36 = sadd.s32 %s35, 1
      %s37 = scalar_select %p34, %s35, %s36
      %p40 = pneg %p34
      %p41 = scmp.eq.s32.totalorder %s13, 1
      %p42 = por %p40, %p41
      %p43 = scmp.ne.s32.totalorder %s35, %s38
      %p44 = scmp.eq.s32.totalorder %s13, 0
      %p45 = por %p43, %p44
      %p46 = scmp.ne.s32.totalorder %s35, %s38
      %p47 = scmp.eq.s32.totalorder %s18, 1
      %p48 = por %p46, %p47
      %p49 = scmp.ne.s32.totalorder %s38, %s39
      %p50 = scmp.eq.s32.totalorder %s18, 0
      %p51 = por %p49, %p50
      %p52 = scmp.ne.s32.totalorder %s38, %s39
      %p53 = scmp.eq.s32.totalorder %s19, 1
      %p54 = por %p52, %p53
      %p56 = scmp.ne.s32.totalorder %s39, %s55
      %p57 = scmp.eq.s32.totalorder %s19, 0
      %p58 = por %p56, %p57
      %s59 = ssub.s32 %s20, %s32
      %s60 = ssub.s32 %s21, %s28
      %s61 = sor.u32 %s59, %s60
      %p62 = scmp.eq.s32.totalorder %s61, 0
      %s64 = sadd.s32 %s63, 1
      %s65 = scalar_select %p62, %s63, %s64
      %p68 = pneg %p62
      %p69 = scmp.eq.s32.totalorder %s13, 1
      %p70 = por %p68, %p69
      %p71 = scmp.ne.s32.totalorder %s63, %s66
      %p72 = scmp.eq.s32.totalorder %s13, 0
      %p73 = por %p71, %p72
      %p74 = scmp.ne.s32.totalorder %s63, %s66
      %p75 = scmp.eq.s32.totalorder %s18, 1
      %p76 = por %p74, %p75
      %p77 = scmp.ne.s32.totalorder %s66, %s67
      %p78 = scmp.eq.s32.totalorder %s18, 0
      %p79 = por %p77, %p78
      %p80 = scmp.ne.s32.totalorder %s66, %s67
      %p81 = scmp.eq.s32.totalorder %s19, 1
      %p82 = por %p80, %p81
      %p84 = scmp.ne.s32.totalorder %s67, %s83
      %p85 = scmp.eq.s32.totalorder %s19, 0
      %p86 = por %p84, %p85
      %s87 = ssub.s32 %s21, %s28
      %p88 = scmp.eq.s32.totalorder %s87, 0
      %s90 = sadd.s32 %s89, 1
      %s91 = scalar_select %p88, %s89, %s90
      %p94 = pneg %p88
      %p95 = scmp.eq.s32.totalorder %s13, 1
      %p96 = por %p94, %p95
      %p97 = scmp.ne.s32.totalorder %s89, %s92
      %p98 = scmp.eq.s32.totalorder %s13, 0
      %p99 = por %p97, %p98
      %p100 = scmp.ne.s32.totalorder %s89, %s92
      %p101 = scmp.eq.s32.totalorder %s18, 1
      %p102 = por %p100, %p101
      %p103 = scmp.ne.s32.totalorder %s92, %s93
      %p104 = scmp.eq.s32.totalorder %s18, 0
      %p105 = por %p103, %p104
      %p106 = scmp.ne.s32.totalorder %s92, %s93
      %p107 = scmp.eq.s32.totalorder %s19, 1
      %p108 = por %p106, %p107
      %p110 = scmp.ne.s32.totalorder %s93, %s109
      %p111 = scmp.eq.s32.totalorder %s19, 0
      %p112 = por %p110, %p111
      %s114 = sadd.s32 %s113, 1
      %p117 = scmp.eq.s32.totalorder %s13, 1
      %p118 = scmp.ne.s32.totalorder %s113, %s115
      %p119 = scmp.eq.s32.totalorder %s13, 0
      %p120 = por %p118, %p119
      %p121 = scmp.ne.s32.totalorder %s113, %s115
      %p122 = scmp.eq.s32.totalorder %s18, 1
      %p123 = por %p121, %p122
      %p124 = scmp.ne.s32.totalorder %s115, %s116
      %p125 = scmp.eq.s32.totalorder %s18, 0
      %p126 = por %p124, %p125
      %p127 = scmp.ne.s32.totalorder %s115, %s116
      %p128 = scmp.eq.s32.totalorder %s19, 1
      %p129 = por %p127, %p128
      %p131 = scmp.ne.s32.totalorder %s116, %s130
      %p132 = scmp.eq.s32.totalorder %s19, 0
      %p133 = por %p131, %p132
      %s134 = ssub.s32 %s20, %s32
      %p135 = scmp.eq.s32.totalorder %s134, 0
      %s137 = sadd.s32 %s136, 1
      %s138 = scalar_select %p135, %s136, %s137
      %p141 = pneg %p135
      %p142 = scmp.eq.s32.totalorder %s13, 1
      %p143 = por %p141, %p142
      %p144 = scmp.ne.s32.totalorder %s136, %s139
      %p145 = scmp.eq.s32.totalorder %s13, 0
      %p146 = por %p144, %p145
      %p147 = scmp.ne.s32.totalorder %s136, %s139
      %p148 = scmp.eq.s32.totalorder %s18, 1
      %p149 = por %p147, %p148
      %p150 = scmp.ne.s32.totalorder %s139, %s140
      %p151 = scmp.eq.s32.totalorder %s18, 0
      %p152 = por %p150, %p151
      %p153 = scmp.ne.s32.totalorder %s139, %s140
      %p154 = scmp.eq.s32.totalorder %s19, 1
      %p155 = por %p153, %p154
      %p157 = scmp.ne.s32.totalorder %s140, %s156
      %p158 = scmp.eq.s32.totalorder %s19, 0
      %p159 = por %p157, %p158
      %p160 = scmp.le.s32.totalorder 1, %s13
      %p161 = scmp.lt.s32.totalorder %s13, 3
      %p162 = pnand %p160, %p161
      %p163 = pneg %p162
      // Predicated region
      $region9: #{tpu_custom_call.1} parent=5 // pred_check
        _
      $region10: #{tpu_custom_call.1} parent=5 // pred_check_branch
        %165 = sbr.rel (%p162) target = $region12
      $region11: #{tpu_custom_call.1} parent=5 // pred_region
        %s166 = ssub.s32 %s13, 1
        // Predicated region
        $region13: #{tpu_custom_call.1} parent=11 // pred_check
          %p167 = pneg %p105
        $region14: #{tpu_custom_call.1} parent=11 // pred_check_branch
          %169 = sbr.rel (%p167) target = $region16
        $region15: #{tpu_custom_call.1} parent=11 // pred_region
          %s170 = smul.u32 4, %s23
          %p171 = scmp.lt.s32.totalorder %s170, 3
          %s172 = scalar_select %p171, %s170, 3
          %s173 = smul.addr %s172, 8
          %s174 = scalar_lea.vmem %s2, %s173
          %s175 = smul.u32 4, %s23
        $region16: #{tpu_custom_call.1} parent=11 // pred_fallthru
          _
        // Predicated region
        $region17: #{tpu_custom_call.1} parent=11 // pred_check
          %p176 = pneg %p126
        $region18: #{tpu_custom_call.1} parent=11 // pred_check_branch
          %178 = sbr.rel (%p176) target = $region20
        $region19: #{tpu_custom_call.1} parent=11 // pred_region
          _
        $region20: #{tpu_custom_call.1} parent=11 // pred_fallthru
          _
      $region12: #{tpu_custom_call.1} parent=5 // pred_fallthru
        _
      %p179 = scmp.lt.s32.totalorder %s13, 2
      // Predicated region
      $region21: #{tpu_custom_call.1} parent=5 // pred_check
        %p180 = pneg %p179
      $region22: #{tpu_custom_call.1} parent=5 // pred_check_branch
        %182 = sbr.rel (%p180) target = $region24
      $region23: #{tpu_custom_call.1} parent=5 // pred_region
        // Predicated region
        $region25: #{tpu_custom_call.1} parent=23 // pred_check
          %p183 = pneg %p45
        $region26: #{tpu_custom_call.1} parent=23 // pred_check_branch
          %185 = sbr.rel (%p183) target = $region28
        $region27: #{tpu_custom_call.1} parent=23 // pred_region
          %p186 = scmp.lt.s32.totalorder %s20, 1
          %s187 = scalar_select %p186, %s20, 1
          %s188 = smul.addr %s187, 2
          %s189 = smul.addr %s188, 8
          %s190 = scalar_lea.vmem %s0, %s189
        $region28: #{tpu_custom_call.1} parent=23 // pred_fallthru
          _
        // Predicated region
        $region29: #{tpu_custom_call.1} parent=23 // pred_check
          %p191 = pneg %p73
        $region30: #{tpu_custom_call.1} parent=23 // pred_check_branch
          %193 = sbr.rel (%p191) target = $region32
        $region31: #{tpu_custom_call.1} parent=23 // pred_region
          %s194 = sand.u32 %s63, 1
          %s195 = scalar_lea.sflag [#allocation4], %s194
          %s196 = sand.u32 %s63, 1
          %s197 = smul.addr %s196, 32
          %s198 = scalar_lea.vmem [#allocation3], %s197
          %s199 = smul.u32 4, %s21
          %201 = vsyncadd %s195, 0
          %s202 = smul.addr %s20, 4
          %s203 = sadd.s32 %s199, %s202
          %s204 = smul.addr %s203, 8
          %s205 = scalar_lea.hbm %s1, %s204
          %s206 = sshll.u32 %s205, 4
          %s207 = int_to_ptr.hbm [resolvable:$true] %s206
          %s208 = sshll.u32 %s198, 4
          %s209 = int_to_ptr.vmem [resolvable:$true] %s208
          %214 = dma.hbm_to_vmem [thread:$0]  %s207, 512, %s209, %s195, 128, 128, 8
        $region32: #{tpu_custom_call.1} parent=23 // pred_fallthru
          _
      $region24: #{tpu_custom_call.1} parent=5 // pred_fallthru
        _
      %p215 = scmp.le.s32.totalorder 1, %s13
      %p216 = scmp.lt.s32.totalorder %s13, 3
      %p217 = pnand %p215, %p216
      %p218 = pneg %p217
      // Predicated region
      $region33: #{tpu_custom_call.1} parent=5 // pred_check
        _
      $region34: #{tpu_custom_call.1} parent=5 // pred_check_branch
        %220 = sbr.rel (%p217) target = $region36
      $region35: #{tpu_custom_call.1} parent=5 // pred_region
        %s221 = ssub.s32 %s13, 1
        %s222 = sand.u32 %s66, 1
        %s223 = scalar_lea.sflag [#allocation4], %s222
        %s224 = sand.u32 %s66, 1
        %s225 = smul.addr %s224, 32
        %s226 = scalar_lea.vmem [#allocation3], %s225
        // Predicated region
        $region37: #{tpu_custom_call.1} parent=35 // pred_check
          %p227 = pneg %p79
        $region38: #{tpu_custom_call.1} parent=35 // pred_check_branch
          %229 = sbr.rel (%p227) target = $region40
        $region39: #{tpu_custom_call.1} parent=35 // pred_region
          %231 = dma.done %s223, 512
        $region40: #{tpu_custom_call.1} parent=35 // pred_fallthru
          _
        %p232 = scmp.lt.s32.totalorder %s22, 1
        %s233 = scalar_select %p232, %s22, 1
        %s234 = smul.addr %s233, 2
        %s235 = smul.addr %s234, 8
        %s236 = scalar_lea.vmem %s0, %s235
        %p237 = pneg %p51
        %p238 = pneg %p48
        %s239 = sand.u32 %s66, 1
        %s240 = scalar_lea.sflag [#allocation4], %s239
        %s241 = sand.u32 %s66, 1
        %s242 = smul.addr %s241, 32
        %s243 = scalar_lea.vmem [#allocation3], %s242
        %p244 = pneg %p79
        %p245 = pneg %p76
        %s246 = smul.u32 4, %s23
        %p247 = scmp.lt.s32.totalorder %s246, 3
        %s248 = scalar_select %p247, %s246, 3
        %s249 = smul.addr %s248, 8
        %s250 = scalar_lea.vmem %s2, %s249
        %p251 = pneg %p105
        %p252 = pneg %p102
        %p253 = pneg %p126
        %p254 = pneg %p123
        %p255 = pneg %p152
        %p256 = pneg %p149
        %p257 = scmp.lt.s32.totalorder %s22, 1
        %s258 = scalar_select %p257, %s22, 1
        %s259 = smul.addr %s258, 2
        %s260 = scalar_lea.vmem %s4, %s259
        %p261 = scmp.lt.s32.totalorder %s22, 1
        %s262 = scalar_select %p261, %s22, 1
        %s263 = smul.addr %s262, 2
        %s264 = smul.addr %s263, 8
        %s265 = scalar_lea.vmem %s0, %s264
        %s266 = smul.u32 4, %s23
        %s267 = smul.u32 4, %s23
        %p268 = scmp.lt.s32.totalorder %s267, 3
        %s269 = scalar_select %p268, %s267, 3
        %s270 = smul.addr %s269, 8
        %s271 = scalar_lea.vmem %s2, %s270
        %s272 = smul.u32 4, %s23
        %p273 = scmp.lt.s32.totalorder %s22, 1
        %s274 = scalar_select %p273, %s22, 1
        %s275 = smul.addr %s274, 2
        %s276 = scalar_lea.vmem %s4, %s275
        %p277 = scmp.eq.s32.totalorder %s23, 0
        // Predicated region
        $region41: #{tpu_custom_call.1} parent=35 // pred_check
          %p278 = pneg %p277
        $region42: #{tpu_custom_call.1} parent=35 // pred_check_branch
          %280 = sbr.rel (%p278) target = $region44
        $region43: #{tpu_custom_call.1} parent=35 // pred_region
          %vm281 = vcmask 254976
          %282 = vst.msk [vmem:[#allocation2] sm:$0x3] %vm281, 0.0
        $region44: #{tpu_custom_call.1} parent=35 // pred_fallthru
          _
        %v283 = vld [vmem:[%s265] sm:$0xff]
        %v284 = vld [vmem:[%s265 + $0x8] sm:$0xff]
        %v285 = vsub.f32 %v284, %v283
        %v286 = vld [vmem:[%s271] sm:$0xff]
        %v287 = vld [vmem:[%s271 + $0x8] sm:$0xff]
        %v288 = vld [vmem:[%s271 + $0x10] sm:$0xff]
        %v289 = vld [vmem:[%s271 + $0x18] sm:$0xff]
        %vm290 = vcmask 64512
        %v292 = vsel %vm290, %v286, 0
        %v295 = vsel %vm290, %v287, 0
        %v298 = vsel %vm290, %v288, 0
        %v301 = vsel %vm290, %v289, 0
        %303 = vmatpush.msra.mxu0 0.0
        %304 = vmatpush.msra.mxu0 0.0
        %305 = vmatpush.msra.mxu0 0.0
        %306 = vmatpush.msra.mxu0 0.0
        %307 = vmatpush.msra.mxu0 0.0
        %308 = vmatpush.msra.mxu0 0.0
        %309 = vmatpush.msra.mxu0 0.0
        %310 = vmatpush.msra.mxu0 0.0
        %311 = vmatpush.msra.mxu0 0.0
        %312 = vmatpush.msra.mxu0 0.0
        %313 = vmatpush.msra.mxu0 0.0
        %314 = vmatpush.msra.mxu0 0.0
        %315 = vmatpush.msra.mxu0 0.0
        %316 = vmatpush.msra.mxu0 0.0
        %317 = vmatpush.msra.mxu0 0.0
        %318 = vmatpush.msra.mxu0 %v285
        %319 = vmatmul.f32.gmra.mxu0 %v292
        %v320 = vpop.f32.mrf.mxu0
        %v321 = vadd.f32 0.0, %v320
        %322 = vmatmul.f32.gmra.mxu0 %v295
        %v323 = vpop.f32.mrf.mxu0
        %v324 = vadd.f32 0.0, %v323
        %325 = vmatmul.f32.gmra.mxu0 %v298
        %v326 = vpop.f32.mrf.mxu0
        %v327 = vadd.f32 0.0, %v326
        %328 = vmatmul.f32.gmra.mxu0 %v301
        %v329 = vpop.f32.mrf.mxu0
        %v330 = vadd.f32 0.0, %v329
        %331 = vdwg.mxu0
        %v332 = vld [vmem:[%s3] sm:$0xff]
        %v334 = vsel %vm290, %v321, 0
        %v337 = vsel %vm290, %v324, 0
        %v340 = vsel %vm290, %v327, 0
        %v343 = vsel %vm290, %v330, 0
        %345 = vmatpush.msra.mxu0 0.0
        %346 = vmatpush.msra.mxu0 0.0
        %347 = vmatpush.msra.mxu0 0.0
        %348 = vmatpush.msra.mxu0 0.0
        %349 = vmatpush.msra.mxu0 0.0
        %350 = vmatpush.msra.mxu0 0.0
        %351 = vmatpush.msra.mxu0 0.0
        %352 = vmatpush.msra.mxu0 0.0
        %353 = vmatpush.msra.mxu0 0.0
        %354 = vmatpush.msra.mxu0 0.0
        %355 = vmatpush.msra.mxu0 0.0
        %356 = vmatpush.msra.mxu0 0.0
        %357 = vmatpush.msra.mxu0 0.0
        %358 = vmatpush.msra.mxu0 0.0
        %359 = vmatpush.msra.mxu0 0.0
        %360 = vmatpush.msra.mxu0 %v332
        %361 = vmatmul.f32.gmra.mxu0 %v334
        %v362 = vpop.f32.mrf.mxu0
        %v363 = vadd.f32 0.0, %v362
        %364 = vmatmul.f32.gmra.mxu0 %v337
        %v365 = vpop.f32.mrf.mxu0
        %v366 = vadd.f32 0.0, %v365
        %367 = vmatmul.f32.gmra.mxu0 %v340
        %v368 = vpop.f32.mrf.mxu0
        %v369 = vadd.f32 0.0, %v368
        %370 = vmatmul.f32.gmra.mxu0 %v343
        %v371 = vpop.f32.mrf.mxu0
        %v372 = vadd.f32 0.0, %v371
        %373 = vdwg.mxu0
        %v374 = vld [vmem:[%s226] sm:$0xff]
        %v375 = vld [vmem:[%s226 + $0x8] sm:$0xff]
        %v376 = vld [vmem:[%s226 + $0x10] sm:$0xff]
        %v377 = vld [vmem:[%s226 + $0x18] sm:$0xff]
        %v378 = vlaneseq
        %v379 = vshrl.u32 %v378, 7
        %v380 = vadd.s32 %v379, 8
        %v381 = vadd.s32 %v379, 16
        %v382 = vadd.s32 %v379, 24
        %s383 = smul.u32 %s23, 32
        %v384 = vstv %s383
        %v385 = vadd.s32 %v379, %v384
        %v386 = vadd.s32 %v380, %v384
        %v387 = vadd.s32 %v381, %v384
        %v388 = vadd.s32 %v382, %v384
        %vm389 = vcmp.ne.s32.totalorder %v374, 4294967041
        %vm390 = vcmp.ne.s32.totalorder %v375, 4294967041
        %vm391 = vcmp.ne.s32.totalorder %v376, 4294967041
        %vm392 = vcmp.ne.s32.totalorder %v377, 4294967041
        %vm393 = vcmp.lt.s32.totalorder %v385, 32
        %vm394 = vcmp.lt.s32.totalorder %v386, 32
        %vm395 = vcmp.lt.s32.totalorder %v387, 32
        %vm396 = vcmp.lt.s32.totalorder %v388, 32
        %v397 = vsel %vm393, 1, 0
        %v398 = vsel %vm394, 1, 0
        %v399 = vsel %vm395, 1, 0
        %v400 = vsel %vm396, 1, 0
        %vm401 = vcmp.eq.s32.totalorder %v397, 1
        %vm402 = vcmp.eq.s32.totalorder %v398, 1
        %vm403 = vcmp.eq.s32.totalorder %v399, 1
        %vm404 = vcmp.eq.s32.totalorder %v400, 1
        %vm405 = vmand %vm389, %vm401
        %vm406 = vmand %vm390, %vm402
        %vm407 = vmand %vm391, %vm403
        %vm408 = vmand %vm392, %vm404
        %vm409 = vcmp.eq.s32.totalorder %v374, 1
        %vm410 = vcmp.eq.s32.totalorder %v375, 1
        %vm411 = vcmp.eq.s32.totalorder %v376, 1
        %vm412 = vcmp.eq.s32.totalorder %v377, 1
        %v413 = vsub.f32 0.0, %v363
        %v414 = vsub.f32 0.0, %v366
        %v415 = vsub.f32 0.0, %v369
        %v416 = vsub.f32 0.0, %v372
        %v417 = vsel %vm409, %v413, %v363
        %v418 = vsel %vm410, %v414, %v366
        %v419 = vsel %vm411, %v415, %v369
        %v420 = vsel %vm412, %v416, %v372
        %v421 = vmax.f32 %v417, 0.0
        %v422 = vmax.f32 %v418, 0.0
        %v423 = vmax.f32 %v419, 0.0
        %v424 = vmax.f32 %v420, 0.0
        %v425 = vand.u32 2147483647, %v417
        %v426 = vand.u32 2147483647, %v418
        %v427 = vand.u32 2147483647, %v419
        %v428 = vand.u32 2147483647, %v420
        %v429 = vsub.f32 0.0, %v425
        %v430 = vsub.f32 0.0, %v426
        %v431 = vsub.f32 0.0, %v427
        %v432 = vsub.f32 0.0, %v428
        %v433 = vmul.f32 %v429, 1.442695
        %v434 = vpow.pop %v433
        %v435 = vmul.f32 %v430, 1.442695
        %v436 = vpow.pop %v435
        %v437 = vmul.f32 %v431, 1.442695
        %v438 = vpow.pop %v437
        %v439 = vmul.f32 %v432, 1.442695
        %v440 = vpow.pop %v439
        %v441 = vadd.f32 %v434, 1.0
        %v442 = vadd.f32 %v436, 1.0
        %v443 = vadd.f32 %v438, 1.0
        %v444 = vadd.f32 %v440, 1.0
        %v445 = vlog2.pop %v441
        %v446 = vmul.f32 %v445, 0.6931472
        %v447 = vlog2.pop %v442
        %v448 = vmul.f32 %v447, 0.6931472
        %v449 = vlog2.pop %v443
        %v450 = vmul.f32 %v449, 0.6931472
        %v451 = vlog2.pop %v444
        %v452 = vmul.f32 %v451, 0.6931472
        %v453 = vadd.f32 %v421, %v446
        %v454 = vadd.f32 %v422, %v448
        %v455 = vadd.f32 %v423, %v450
        %v456 = vadd.f32 %v424, %v452
        %v457 = vld [vmem:[#allocation2] sm:$0x1]
        %v458 = vsel %vm405, %v453, 0.0
        %v459 = vsel %vm406, %v454, 0.0
        %v460 = vsel %vm407, %v455, 0.0
        %v461 = vsel %vm408, %v456, 0.0
        %vm462 = vcmask 261120
        %v463 = vsel %vm462, %v458, 0.0
        %v464 = vsel %vm462, %v459, 0.0
        %v465 = vadd.f32 %v463, %v464
        %v466 = vsel %vm462, %v460, 0.0
        %v467 = vadd.f32 %v465, %v466
        %v468 = vsel %vm462, %v461, 0.0
        %v469 = vadd.f32 %v467, %v468
        %v470 = vrot.slane %v469, 4
        %v471 = vadd.f32 %v469, %v470
        %v472 = vrot.slane %v471, 2
        %v473 = vadd.f32 %v471, %v472
        %v474 = vrot.slane %v473, 1
        %v475 = vadd.f32 %v473, %v474
        %v476 = vadd.f32 %v457, %v475
        %vm477 = vcmask 253952
        %478 = vst.msk [vmem:[#allocation2] sm:$0x1] %vm477, %v476
        %v479 = vld [vmem:[#allocation2 + $0x1] sm:$0x1]
        %v480 = vsel %vm405, 1, 0
        %v481 = vsel %vm406, 1, 0
        %v482 = vsel %vm407, 1, 0
        %v483 = vsel %vm408, 1, 0
        %v484 = vcvt.s32.f32 %v480
        %v485 = vcvt.s32.f32 %v481
        %v486 = vcvt.s32.f32 %v482
        %v487 = vcvt.s32.f32 %v483
        %v488 = vsel %vm462, %v484, 0.0
        %v489 = vsel %vm462, %v485, 0.0
        %v490 = vadd.f32 %v488, %v489
        %v491 = vsel %vm462, %v486, 0.0
        %v492 = vadd.f32 %v490, %v491
        %v493 = vsel %vm462, %v487, 0.0
        %v494 = vadd.f32 %v492, %v493
        %v495 = vrot.slane %v494, 4
        %v496 = vadd.f32 %v494, %v495
        %v497 = vrot.slane %v496, 2
        %v498 = vadd.f32 %v496, %v497
        %v499 = vrot.slane %v498, 1
        %v500 = vadd.f32 %v498, %v499
        %v501 = vadd.f32 %v479, %v500
        %502 = vst.msk [vmem:[#allocation2 + $0x1] sm:$0x1] %vm477, %v501
        // Predicated region
        $region45: #{tpu_custom_call.1} parent=35 // pred_check
          %p503 = pneg %p277
        $region46: #{tpu_custom_call.1} parent=35 // pred_check_branch
          %505 = sbr.rel (%p503) target = $region48
        $region47: #{tpu_custom_call.1} parent=35 // pred_region
          %v506 = vld [vmem:[#allocation2] sm:$0x3]
          %vm507 = vcmask 254976
          %v508 = vsel %vm507, %v506, 0.0
          %509 = vadd.xlane.f32.xlu0 %v508
          %v510 = vpop.xlane.xlu0 %509
          %vm511 = vcmask 1024
          %512 = vst.msk [vmem:[%s276] sm:$0x3] %vm511, %v510
        $region48: #{tpu_custom_call.1} parent=35 // pred_fallthru
          _
        %p513 = scmp.lt.s32.totalorder %s22, 1
        %s514 = scalar_select %p513, %s22, 1
        %s515 = smul.addr %s514, 2
        %s516 = scalar_lea.vmem %s4, %s515
        // Predicated region
        $region49: #{tpu_custom_call.1} parent=35 // pred_check
          %p517 = pneg %p149
        $region50: #{tpu_custom_call.1} parent=35 // pred_check_branch
          %519 = sbr.rel (%p517) target = $region52
        $region51: #{tpu_custom_call.1} parent=35 // pred_region
          _
        $region52: #{tpu_custom_call.1} parent=35 // pred_fallthru
          _
      $region36: #{tpu_custom_call.1} parent=5 // pred_fallthru
        _
      %p520 = scmp.le.s32.totalorder 2, %s13
      // Predicated region
      $region53: #{tpu_custom_call.1} parent=5 // pred_check
        %p521 = pneg %p520
      $region54: #{tpu_custom_call.1} parent=5 // pred_check_branch
        %523 = sbr.rel (%p521) target = $region56
      $region55: #{tpu_custom_call.1} parent=5 // pred_region
        %s524 = ssub.s32 %s13, 2
        // Predicated region
        $region57: #{tpu_custom_call.1} parent=55 // pred_check
          %p525 = pneg %p155
        $region58: #{tpu_custom_call.1} parent=55 // pred_check_branch
          %527 = sbr.rel (%p525) target = $region60
        $region59: #{tpu_custom_call.1} parent=55 // pred_region
          %p528 = scmp.lt.s32.totalorder %s24, 1
          %s529 = scalar_select %p528, %s24, 1
          %s530 = smul.addr %s529, 2
          %s531 = scalar_lea.vmem %s4, %s530
        $region60: #{tpu_custom_call.1} parent=55 // pred_fallthru
          _
      $region56: #{tpu_custom_call.1} parent=5 // pred_fallthru
        _
    $region6: #{tpu_custom_call.1} parent=1 // loop_footer
      %s17 = sadd.s32 1, %s13
    $region7: #{tpu_custom_call.1} parent=1 // loop_footer_branch
      %12 = sbr.rel target = $region3
    $region8: #{tpu_custom_call.1} parent=1 // loop_exit
      _
    %532 = vsyncpa [#allocation4], 1
    %s533 = scalar_lea.sflag [#allocation4], 1
    %534 = vsyncpa %s533, 1

</llo_original>
